<compile_context>
chip_gen: v5e
topology: v5e:2x2
jax: 0.10.0
libtpu: 0.0.40
codegen_flags: <defaults>
</compile_context>

<pallas_src>
import jax
import jax.numpy as jnp
from jax.experimental import pallas as pl
from jax.experimental.pallas import tpu as pltpu


def _biased_obs_kernel(x_ref, sv_ref, bias_ref, out_ref):
    """Hot path: 3 elementwise diffs/FMAs, sqrt, bias add. Pure VPU/EUP.

    x_ref   : (8,)    SMEM  state vector [px, vx, py, vy, pz, vz, cb, cd]
    sv_ref  : (3, n)  VMEM  satellite positions (coords on sublanes, n on lanes)
    bias_ref: (1, n)  VMEM  trainable per-measurement bias (lane-dense row)
    out_ref : (1, n)  VMEM  predicted pseudoranges (lane-dense row)
    """
    px = x_ref[0]
    py = x_ref[2]
    pz = x_ref[4]
    clk = x_ref[6]

    dx = sv_ref[0:1, :] - px            # (1, n)  VPU
    dy = sv_ref[1:2, :] - py            # (1, n)  VPU
    dz = sv_ref[2:3, :] - pz            # (1, n)  VPU
    d2 = dx * dx + dy * dy + dz * dz    # (1, n)  VPU — no XLU reduce

    out_ref[...] = jnp.sqrt(d2) + clk + bias_ref[...]   # single unmasked vst


def biased_observation_model(x: jax.Array, sv_pos: jax.Array,
                             bias: jax.Array) -> jax.Array:
    """Pallas equivalent of BiasedObservationModel(trainable=True).forward.

    Args:
        x:      (8,)   state vector [px, vx, py, vy, pz, vz, cb, cd]
        sv_pos: (n, 3) satellite positions
        bias:   (n,)   trainable bias (zeros at init; zeros == trainable=False)

    Returns:
        (n,) predicted measurements.
    """
    n = sv_pos.shape[0]
    x = x.astype(jnp.float32)
    sv_t = sv_pos.astype(jnp.float32).T          # (3, n): coords -> sublanes
    bias_row = bias.astype(jnp.float32).reshape(1, n)

    out_row = pl.pallas_call(
        _biased_obs_kernel,
        out_shape=jax.ShapeDtypeStruct((1, n), jnp.float32),
        in_specs=[
            pl.BlockSpec(memory_space=pltpu.MemorySpace.SMEM),  # x (8,) scalars
            pl.BlockSpec(memory_space=pltpu.MemorySpace.VMEM),  # sv (3, n)
            pl.BlockSpec(memory_space=pltpu.MemorySpace.VMEM),  # bias (1, n)
        ],
        out_specs=pl.BlockSpec(memory_space=pltpu.MemorySpace.VMEM),
    )(x, sv_t, bias_row)

    return out_row[0, :]


def _reference(x, sv_pos, bias):
    pos = x[jnp.array([0, 2, 4])]
    return jnp.linalg.norm(pos[None, :] - sv_pos, axis=1) + x[6] + bias


if __name__ == "__main__":
    key = jax.random.PRNGKey(0)
    k_x, k_sv = jax.random.split(key)

    dim_measurement = 8          # number of satellites n == dim_measurement
    x = jax.random.normal(k_x, (8,), dtype=jnp.float32) * 10.0
    sv_pos = jax.random.normal(k_sv, (dim_measurement, 3), dtype=jnp.float32) * 100.0
    # trainable=True init: nn.Parameter(torch.zeros(dim_measurement))
    bias = jnp.zeros((dim_measurement,), dtype=jnp.float32)

    out = biased_observation_model(x, sv_pos, bias)
    out = jax.block_until_ready(out)

    ref = _reference(x, sv_pos, bias)
    assert out.shape == (dim_measurement,)
    assert jnp.allclose(out, ref, rtol=1e-5, atol=1e-5), (out, ref)

    print("KERNEL_OK")
</pallas_src>

<mosaic_0001>
module attributes {stable_mosaic.version = 11 : i64} {
  func.func @_biased_obs_kernel(%arg0: memref<8xf32, #tpu.memory_space<smem>>, %arg1: memref<3x8xf32, #tpu.memory_space<vmem>>, %arg2: memref<1x8xf32, #tpu.memory_space<vmem>>, %arg3: memref<1x8xf32, #tpu.memory_space<vmem>>) attributes {dimension_semantics = [], scalar_prefetch = 0 : i64, scratch_operands = 0 : i64, tpu.core_type = #tpu.core_type<tc>} {
    %c0 = arith.constant 0 : index
    %0 = memref.load %arg0[%c0] : memref<8xf32, #tpu.memory_space<smem>>
    %c2 = arith.constant 2 : index
    %1 = memref.load %arg0[%c2] : memref<8xf32, #tpu.memory_space<smem>>
    %c4 = arith.constant 4 : index
    %2 = memref.load %arg0[%c4] : memref<8xf32, #tpu.memory_space<smem>>
    %c6 = arith.constant 6 : index
    %3 = memref.load %arg0[%c6] : memref<8xf32, #tpu.memory_space<smem>>
    %c0_0 = arith.constant 0 : index
    %c0_1 = arith.constant 0 : index
    %4 = vector.load %arg1[%c0_0, %c0_1] : memref<3x8xf32, #tpu.memory_space<vmem>>, vector<1x8xf32>
    %5 = vector.broadcast %0 : f32 to vector<1x8xf32>
    %6 = arith.subf %4, %5 : vector<1x8xf32>
    %c1 = arith.constant 1 : index
    %c0_2 = arith.constant 0 : index
    %7 = vector.load %arg1[%c1, %c0_2] : memref<3x8xf32, #tpu.memory_space<vmem>>, vector<1x8xf32>
    %8 = vector.broadcast %1 : f32 to vector<1x8xf32>
    %9 = arith.subf %7, %8 : vector<1x8xf32>
    %c2_3 = arith.constant 2 : index
    %c0_4 = arith.constant 0 : index
    %10 = vector.load %arg1[%c2_3, %c0_4] : memref<3x8xf32, #tpu.memory_space<vmem>>, vector<1x8xf32>
    %11 = vector.broadcast %2 : f32 to vector<1x8xf32>
    %12 = arith.subf %10, %11 : vector<1x8xf32>
    %13 = arith.mulf %6, %6 : vector<1x8xf32>
    %14 = arith.mulf %9, %9 : vector<1x8xf32>
    %15 = arith.addf %13, %14 : vector<1x8xf32>
    %16 = arith.mulf %12, %12 : vector<1x8xf32>
    %17 = arith.addf %15, %16 : vector<1x8xf32>
    %18 = math.sqrt %17 : vector<1x8xf32>
    %19 = vector.broadcast %3 : f32 to vector<1x8xf32>
    %20 = arith.addf %18, %19 : vector<1x8xf32>
    %c0_5 = arith.constant 0 : index
    %c0_6 = arith.constant 0 : index
    %21 = vector.load %arg2[%c0_5, %c0_6] : memref<1x8xf32, #tpu.memory_space<vmem>>, vector<1x8xf32>
    %22 = arith.addf %20, %21 : vector<1x8xf32>
    %c0_7 = arith.constant 0 : index
    %c0_8 = arith.constant 0 : index
    %23 = vector.load %arg3[%c0_7, %c0_8] : memref<1x8xf32, #tpu.memory_space<vmem>>, vector<1x8xf32>
    tpu.vector_store %arg3[%c0_7, %c0_8], %22 {strides = array<i32>} : memref<1x8xf32, #tpu.memory_space<vmem>>, vector<1x8xf32>,
    return
  }
}

</mosaic_0001>

<llo_original>
// kernel: tpu_custom_call.1
$region0: #{tpu_custom_call.1}
  #allocation0 [shape = 'u32[]', space=smem, size = 0x4, offset = 0x4, fixed_abs, tag = 'smem constant byte address 0x4 - core index']
  #allocation1 [shape = 'u32[72,128]{1,0:T(1,128)}', space=vmem, size = 0x9000, scoped, tag = 'internal scratch']
  %s0 = inlined_call_operand.hbm [shape: f32[8], index: 0, kind: input, shape index: {}]
  %s1 = inlined_call_operand.hbm [shape: f32[3,8], index: 1, kind: input, shape index: {}]
  %s2 = inlined_call_operand.vmem [shape: f32[1,8], index: 2, kind: input, shape index: {}]
  %s3 = inlined_call_operand.hbm [shape: f32[1,8], index: 3, kind: output, shape index: {}]
  %s4 = sld [smem:[#allocation0]]
  $region30: #{tpu_custom_call.1} parent=0
    _
  %s6 = ssub.s32 1, %s4
  %s7 = scalar_select 0, %s6, %s4
  $region1: #{tpu_custom_call.1} parent=0
    #allocation2 [shape = 'u8[512]{0}', space=smem, size = 0x200, scoped, tag = 'input window, operand 0, single buffered']
    #allocation3 [shape = 's32[1]{0}', space=sflag, size = 0x4, scoped, tag = 'scoped memory for tpu_custom_call.1']
    #allocation4 [shape = 's32[1]{0}', space=sflag, size = 0x4, scoped, tag = 'scoped memory for tpu_custom_call.1']
    #allocation5 [shape = 's32[1]{0}', space=sflag, size = 0x4, scoped, tag = 'scoped memory for tpu_custom_call.1']
    #allocation6 [shape = 'u8[2048]{0}', space=vmem, size = 0x800, scoped, tag = 'input window, operand 1, single buffered']
    #allocation7 [shape = 'u8[512]{0}', space=vmem, size = 0x400, scoped, tag = 'output window, operand 0, single buffered']
    %8 = vsyncpa [#allocation5], 0
    %9 = vsyncpa [#allocation3], 0
    %10 = vsyncpa [#allocation4], 0
    // Predicated region
    $region2: #{tpu_custom_call.1} parent=1 // pred_check
      _
    $region3: #{tpu_custom_call.1} parent=1 // pred_check_branch
      %12 = sbr.rel (0) target = $region5
    $region4: #{tpu_custom_call.1} parent=1 // pred_region
      %14 = vsyncadd [#allocation5], 0
      %s16 = sshll.u32 %s0, 4
      %s17 = int_to_ptr.hbm [resolvable:$true] %s16
      %19 = dma.hbm_to_smem %s17, 16, [#allocation2], [#allocation5]
    $region5: #{tpu_custom_call.1} parent=1 // pred_fallthru
      _
    // Predicated region
    $region6: #{tpu_custom_call.1} parent=1 // pred_check
      _
    $region7: #{tpu_custom_call.1} parent=1 // pred_check_branch
      %21 = sbr.rel (0) target = $region9
    $region8: #{tpu_custom_call.1} parent=1 // pred_region
      %23 = vsyncadd [#allocation3], 0
      %s25 = sshll.u32 %s1, 4
      %s26 = int_to_ptr.hbm [resolvable:$true] %s25
      %s27 = sshll.u32 [#allocation6], 4
      %s28 = int_to_ptr.vmem [resolvable:$true] %s27
      %30 = dma.hbm_to_vmem [thread:$0]  %s26, 64, %s28, [#allocation3]
    $region9: #{tpu_custom_call.1} parent=1 // pred_fallthru
      _
    // Predicated region
    $region10: #{tpu_custom_call.1} parent=1 // pred_check
      _
    $region11: #{tpu_custom_call.1} parent=1 // pred_check_branch
      %32 = sbr.rel (0) target = $region13
    $region12: #{tpu_custom_call.1} parent=1 // pred_region
      _
    $region13: #{tpu_custom_call.1} parent=1 // pred_fallthru
      _
    // Predicated region
    $region14: #{tpu_custom_call.1} parent=1 // pred_check
      _
    $region15: #{tpu_custom_call.1} parent=1 // pred_check_branch
      %34 = sbr.rel (0) target = $region17
    $region16: #{tpu_custom_call.1} parent=1 // pred_region
      %36 = dma.done [#allocation5], 16
    $region17: #{tpu_custom_call.1} parent=1 // pred_fallthru
      _
    // Predicated region
    $region18: #{tpu_custom_call.1} parent=1 // pred_check
      _
    $region19: #{tpu_custom_call.1} parent=1 // pred_check_branch
      %38 = sbr.rel (0) target = $region21
    $region20: #{tpu_custom_call.1} parent=1 // pred_region
      %40 = dma.done [#allocation3], 64
    $region21: #{tpu_custom_call.1} parent=1 // pred_fallthru
      _
    %41 = sfence
    %s42 = sld [smem:[#allocation2]]
    %s43 = sld [smem:[#allocation2 + $0x2]]
    %s44 = sld [smem:[#allocation2 + $0x4]]
    %s45 = sld [smem:[#allocation2 + $0x6]]
    %v46 = vld [vmem:[#allocation6] sm:$0x1]
    %v47 = vstv %s42
    %v48 = vsub.f32 %v46, %v47
    %v49 = vld [vmem:[#allocation6 + $0x1] sm:$0x1]
    %v50 = vstv %s43
    %v51 = vsub.f32 %v49, %v50
    %v52 = vld [vmem:[#allocation6 + $0x2] sm:$0x1]
    %v53 = vstv %s44
    %v54 = vsub.f32 %v52, %v53
    %v55 = vmul.f32 %v48, %v48
    %v56 = vmul.f32 %v51, %v51
    %v57 = vadd.f32 %v55, %v56
    %v58 = vmul.f32 %v54, %v54
    %v59 = vadd.f32 %v57, %v58
    %v60 = vrsqrt.pop %v59
    %v61 = vmul.f32 %v60, %v59
    %v62 = vmul.f32 %v61, %v60
    %v63 = vmul.f32 0.5, %v62
    %v64 = vsub.f32 1.5, %v63
    %v65 = vmul.f32 %v60, %v64
    %v66 = vmul.f32 %v59, %v65
    %vm67 = vcmp.eq.f32.partialorder %v59, inf
    %v68 = vsel %vm67, %v59, %v66
    %vm69 = vcmp.eq.f32.partialorder %v59, 0.0
    %v70 = vand.u32 %v59, 2147483648
    %v71 = vsel %vm69, %v70, %v68
    %v72 = vstv %s45
    %v73 = vadd.f32 %v71, %v72
    %v74 = vld [vmem:[%s2] sm:$0x1]
    %v75 = vadd.f32 %v73, %v74
    %vm76 = vcmask 57344
    %77 = vst.msk [vmem:[#allocation7] sm:$0x1] %vm76, %v75
    // Predicated region
    $region22: #{tpu_custom_call.1} parent=1 // pred_check
      _
    $region23: #{tpu_custom_call.1} parent=1 // pred_check_branch
      %79 = sbr.rel (0) target = $region25
    $region24: #{tpu_custom_call.1} parent=1 // pred_region
      %81 = vsyncadd [#allocation4], 0
      %s83 = sshll.u32 [#allocation7], 4
      %s84 = int_to_ptr.vmem [resolvable:$true] %s83
      %s85 = sshll.u32 %s3, 4
      %s86 = int_to_ptr.hbm [resolvable:$true] %s85
      %88 = dma.vmem_to_hbm [thread:$0]  %s84, 16, %s86, [#allocation4]
    $region25: #{tpu_custom_call.1} parent=1 // pred_fallthru
      _
    // Predicated region
    $region26: #{tpu_custom_call.1} parent=1 // pred_check
      _
    $region27: #{tpu_custom_call.1} parent=1 // pred_check_branch
      %90 = sbr.rel (0) target = $region29
    $region28: #{tpu_custom_call.1} parent=1 // pred_region
      %92 = dma.done [#allocation4], 16
    $region29: #{tpu_custom_call.1} parent=1 // pred_fallthru
      _
    %93 = vsyncpa [#allocation3], 1
    %94 = vsyncpa [#allocation4], 1
    %95 = vsyncpa [#allocation5], 1

</llo_original>
